<compile_context>
chip_gen: v7x
topology: tpu7x:2x2x1
jax: 0.10.0
libtpu: 0.0.40
codegen_flags: <defaults>
</compile_context>

<pallas_src>
import functools

import jax
import jax.numpy as jnp
from jax.experimental import pallas as pl
from jax.experimental.pallas import tpu as pltpu

N_HARM = 6

# Cap on bR*C (f32 elements per input tile): 128K elems = 0.5 MiB input tile,
# 1.5 MiB output tile; with double-buffering + live temporaries ~7.5 MiB VMEM.
_MAX_TILE_ELEMS = 128 * 1024


def _lissajous_kernel(a0_ref, a_ref, b_ref, t_ref, out_ref, *, n_harm):
    # t_ref: (bR, C) VMEM tile of the per-batch-flattened input.
    # out_ref: (3, bR, C) VMEM tile (channel-major within this batch slab).
    # a0_ref: (3,), a_ref/b_ref: (3, n_harm) -- scalar coefficients in SMEM.
    t = t_ref[...]

    # Read every coefficient out of SMEM once (cheap scalar loads).
    a0 = [a0_ref[c] for c in range(3)]
    a = [[a_ref[c, i] for i in range(n_harm)] for c in range(3)]
    b = [[b_ref[c, i] for i in range(n_harm)] for c in range(3)]

    # Only two transcendental evaluations per tile; higher harmonics come
    # from the angle-addition recurrence (pure VPU FMAs).
    s1 = jnp.sin(t)
    c1 = jnp.cos(t)

    accs = [jnp.full(t.shape, a0[c], dtype=t.dtype) for c in range(3)]

    s_i, c_i = s1, c1
    for i in range(n_harm):  # statically unrolled (n_harm = 6)
        if i > 0:
            s_i, c_i = s_i * c1 + c_i * s1, c_i * c1 - s_i * s1
        for ch in range(3):
            accs[ch] = accs[ch] + a[ch][i] * s_i + b[ch][i] * c_i

    # Each (bR, C) channel slab is a dense, unmasked sublane/lane-aligned store.
    for ch in range(3):
        out_ref[ch, :, :] = accs[ch]


def _pick_block(dim, cap, align):
    """Largest multiple of `align` <= cap that evenly divides dim, else dim."""
    if dim <= cap:
        return dim
    blk = (cap // align) * align
    while blk >= align:
        if dim % blk == 0:
            return blk
        blk -= align
    # TODO(synk): pathological dims (huge prime R) fall back to a single
    # full-extent block, which may exceed scoped VMEM; pad N in that case.
    return dim


def lissajous_fit(t, a0, a, b, *, n_harm=N_HARM, block_rows=None):
    """t: (B, N) f32; a0: (3,) f32; a, b: (3, n_harm) f32 -> (B, 3, N) f32."""
    t = jnp.asarray(t, jnp.float32)
    a0 = jnp.asarray(a0, jnp.float32)
    a = jnp.asarray(a, jnp.float32)
    b = jnp.asarray(b, jnp.float32)
    B, N = t.shape

    # Per-batch flatten: (B, N) -> (B, R, C) with C a lane multiple so the
    # compute tile fills sublanes/lanes even for tiny B.
    if N % 128 == 0:
        C = 128
        R = N // 128
    else:
        # Fallback: whole row as one lane-dim block (legal: block == full dim).
        C = N
        R = 1

    cap = max(1, _MAX_TILE_ELEMS // C)
    if block_rows is not None:
        assert R % block_rows == 0, (
            f"block_rows={block_rows} must divide R={R} (N={N}, C={C})")
        assert block_rows % 8 == 0 or block_rows == R, (
            f"block_rows={block_rows} must be a multiple of 8 or equal R={R}")
        bR = block_rows
    else:
        bR = _pick_block(R, cap, 8)

    grid = (B, R // bR)
    t_r = t.reshape(B, R, C)

    kernel = functools.partial(_lissajous_kernel, n_harm=n_harm)
    out4 = pl.pallas_call(
        kernel,
        out_shape=jax.ShapeDtypeStruct((B, 3, R, C), jnp.float32),
        grid=grid,
        in_specs=[
            pl.BlockSpec(memory_space=pltpu.SMEM),   # a0 (3,)
            pl.BlockSpec(memory_space=pltpu.SMEM),   # a  (3, n_harm)
            pl.BlockSpec(memory_space=pltpu.SMEM),   # b  (3, n_harm)
            pl.BlockSpec((None, bR, C), lambda bi, j: (bi, j, 0)),   # t tile
        ],
        out_specs=pl.BlockSpec((None, 3, bR, C), lambda bi, j: (bi, 0, j, 0)),
        compiler_params=pltpu.CompilerParams(
            dimension_semantics=("parallel", "parallel"),
        ),
    )(a0, a, b, t_r)

    # (B, 3, R, C) -> (B, 3, N): contiguous reshape, no transpose pass.
    return out4.reshape(B, 3, N)


def lissajous_ref(t, a0, a, b, *, n_harm=N_HARM):
    """Pure-JAX reference mirroring the PyTorch forward (direct sin/cos)."""
    chans = []
    for c in range(3):
        acc = a0[c] + 0.0 * t
        for i in range(1, n_harm + 1):
            it = i * t
            acc = acc + a[c, i - 1] * jnp.sin(it) + b[c, i - 1] * jnp.cos(it)
        chans.append(acc)
    return jnp.stack(chans, axis=1)


if __name__ == "__main__":
    key = jax.random.PRNGKey(0)
    k_t, k_a0, k_a, k_b = jax.random.split(key, 4)

    B, N = 2, 512
    t = jax.random.uniform(k_t, (B, N), dtype=jnp.float32,
                           minval=0.0, maxval=2.0 * jnp.pi)

    # Module __init__ uses zeros; init with nonzero values so every term is
    # exercised.
    a0 = jax.random.normal(k_a0, (3,), dtype=jnp.float32)
    a = jax.random.normal(k_a, (3, N_HARM), dtype=jnp.float32)
    b = jax.random.normal(k_b, (3, N_HARM), dtype=jnp.float32)

    out = jax.block_until_ready(lissajous_fit(t, a0, a, b))
    ref = lissajous_ref(t, a0, a, b)
    assert out.shape == (B, 3, N)
    # Slightly relaxed tolerance: the angle-addition recurrence drifts a few
    # ulps per harmonic relative to direct sin(i*t)/cos(i*t).
    err = float(jnp.max(jnp.abs(out - ref)))
    assert jnp.allclose(out, ref, atol=1e-4, rtol=1e-4), err

    # Second check: exercise a multi-tile grid on both axes (R=16, bR=8 ->
    # grid (2, 2)) and a wider t range.
    t2 = jax.random.uniform(k_t, (2, 2048), dtype=jnp.float32,
                            minval=-5.0, maxval=5.0)
    out2 = jax.block_until_ready(lissajous_fit(t2, a0, a, b, block_rows=8))
    ref2 = lissajous_ref(t2, a0, a, b)
    err2 = float(jnp.max(jnp.abs(out2 - ref2)))
    assert out2.shape == (2, 3, 2048)
    assert jnp.allclose(out2, ref2, atol=1e-4, rtol=1e-4), err2

    print("KERNEL_OK")
</pallas_src>

<mosaic_0001>
module attributes {stable_mosaic.version = 11 : i64} {
  func.func @_lissajous_kernel(%arg0: i32, %arg1: i32, %arg2: memref<3xf32, #tpu.memory_space<smem>>, %arg3: memref<3x6xf32, #tpu.memory_space<smem>>, %arg4: memref<3x6xf32, #tpu.memory_space<smem>>, %arg5: memref<1x4x128xf32, #tpu.memory_space<vmem>>, %arg6: memref<1x3x4x128xf32, #tpu.memory_space<vmem>>) attributes {dimension_semantics = [#tpu.dimension_semantics<parallel>, #tpu.dimension_semantics<parallel>], iteration_bounds = array<i64: 2, 1>, scalar_prefetch = 0 : i64, scratch_operands = 0 : i64, tpu.core_type = #tpu.core_type<tc>, window_params = [{transform_indices = @transform_0, window_bounds = array<i64: 3>}, {transform_indices = @transform_1, window_bounds = array<i64: 3, 6>}, {transform_indices = @transform_2, window_bounds = array<i64: 3, 6>}, {transform_indices = @transform_3, window_bounds = array<i64: 1, 4, 128>}, {transform_indices = @transform_4, window_bounds = array<i64: 1, 3, 4, 128>}]} {
    %c0 = arith.constant 0 : index
    %c0_0 = arith.constant 0 : index
    %c0_1 = arith.constant 0 : index
    %0 = vector.load %arg5[%c0, %c0_0, %c0_1] : memref<1x4x128xf32, #tpu.memory_space<vmem>>, vector<1x4x128xf32>
    %1 = vector.shape_cast %0 : vector<1x4x128xf32> to vector<4x128xf32>
    %c0_2 = arith.constant 0 : index
    %2 = memref.load %arg2[%c0_2] : memref<3xf32, #tpu.memory_space<smem>>
    %c1 = arith.constant 1 : index
    %3 = memref.load %arg2[%c1] : memref<3xf32, #tpu.memory_space<smem>>
    %c2 = arith.constant 2 : index
    %4 = memref.load %arg2[%c2] : memref<3xf32, #tpu.memory_space<smem>>
    %c0_3 = arith.constant 0 : index
    %c0_4 = arith.constant 0 : index
    %5 = memref.load %arg3[%c0_3, %c0_4] : memref<3x6xf32, #tpu.memory_space<smem>>
    %c0_5 = arith.constant 0 : index
    %c1_6 = arith.constant 1 : index
    %6 = memref.load %arg3[%c0_5, %c1_6] : memref<3x6xf32, #tpu.memory_space<smem>>
    %c0_7 = arith.constant 0 : index
    %c2_8 = arith.constant 2 : index
    %7 = memref.load %arg3[%c0_7, %c2_8] : memref<3x6xf32, #tpu.memory_space<smem>>
    %c0_9 = arith.constant 0 : index
    %c3 = arith.constant 3 : index
    %8 = memref.load %arg3[%c0_9, %c3] : memref<3x6xf32, #tpu.memory_space<smem>>
    %c0_10 = arith.constant 0 : index
    %c4 = arith.constant 4 : index
    %9 = memref.load %arg3[%c0_10, %c4] : memref<3x6xf32, #tpu.memory_space<smem>>
    %c0_11 = arith.constant 0 : index
    %c5 = arith.constant 5 : index
    %10 = memref.load %arg3[%c0_11, %c5] : memref<3x6xf32, #tpu.memory_space<smem>>
    %c1_12 = arith.constant 1 : index
    %c0_13 = arith.constant 0 : index
    %11 = memref.load %arg3[%c1_12, %c0_13] : memref<3x6xf32, #tpu.memory_space<smem>>
    %c1_14 = arith.constant 1 : index
    %c1_15 = arith.constant 1 : index
    %12 = memref.load %arg3[%c1_14, %c1_15] : memref<3x6xf32, #tpu.memory_space<smem>>
    %c1_16 = arith.constant 1 : index
    %c2_17 = arith.constant 2 : index
    %13 = memref.load %arg3[%c1_16, %c2_17] : memref<3x6xf32, #tpu.memory_space<smem>>
    %c1_18 = arith.constant 1 : index
    %c3_19 = arith.constant 3 : index
    %14 = memref.load %arg3[%c1_18, %c3_19] : memref<3x6xf32, #tpu.memory_space<smem>>
    %c1_20 = arith.constant 1 : index
    %c4_21 = arith.constant 4 : index
    %15 = memref.load %arg3[%c1_20, %c4_21] : memref<3x6xf32, #tpu.memory_space<smem>>
    %c1_22 = arith.constant 1 : index
    %c5_23 = arith.constant 5 : index
    %16 = memref.load %arg3[%c1_22, %c5_23] : memref<3x6xf32, #tpu.memory_space<smem>>
    %c2_24 = arith.constant 2 : index
    %c0_25 = arith.constant 0 : index
    %17 = memref.load %arg3[%c2_24, %c0_25] : memref<3x6xf32, #tpu.memory_space<smem>>
    %c2_26 = arith.constant 2 : index
    %c1_27 = arith.constant 1 : index
    %18 = memref.load %arg3[%c2_26, %c1_27] : memref<3x6xf32, #tpu.memory_space<smem>>
    %c2_28 = arith.constant 2 : index
    %c2_29 = arith.constant 2 : index
    %19 = memref.load %arg3[%c2_28, %c2_29] : memref<3x6xf32, #tpu.memory_space<smem>>
    %c2_30 = arith.constant 2 : index
    %c3_31 = arith.constant 3 : index
    %20 = memref.load %arg3[%c2_30, %c3_31] : memref<3x6xf32, #tpu.memory_space<smem>>
    %c2_32 = arith.constant 2 : index
    %c4_33 = arith.constant 4 : index
    %21 = memref.load %arg3[%c2_32, %c4_33] : memref<3x6xf32, #tpu.memory_space<smem>>
    %c2_34 = arith.constant 2 : index
    %c5_35 = arith.constant 5 : index
    %22 = memref.load %arg3[%c2_34, %c5_35] : memref<3x6xf32, #tpu.memory_space<smem>>
    %c0_36 = arith.constant 0 : index
    %c0_37 = arith.constant 0 : index
    %23 = memref.load %arg4[%c0_36, %c0_37] : memref<3x6xf32, #tpu.memory_space<smem>>
    %c0_38 = arith.constant 0 : index
    %c1_39 = arith.constant 1 : index
    %24 = memref.load %arg4[%c0_38, %c1_39] : memref<3x6xf32, #tpu.memory_space<smem>>
    %c0_40 = arith.constant 0 : index
    %c2_41 = arith.constant 2 : index
    %25 = memref.load %arg4[%c0_40, %c2_41] : memref<3x6xf32, #tpu.memory_space<smem>>
    %c0_42 = arith.constant 0 : index
    %c3_43 = arith.constant 3 : index
    %26 = memref.load %arg4[%c0_42, %c3_43] : memref<3x6xf32, #tpu.memory_space<smem>>
    %c0_44 = arith.constant 0 : index
    %c4_45 = arith.constant 4 : index
    %27 = memref.load %arg4[%c0_44, %c4_45] : memref<3x6xf32, #tpu.memory_space<smem>>
    %c0_46 = arith.constant 0 : index
    %c5_47 = arith.constant 5 : index
    %28 = memref.load %arg4[%c0_46, %c5_47] : memref<3x6xf32, #tpu.memory_space<smem>>
    %c1_48 = arith.constant 1 : index
    %c0_49 = arith.constant 0 : index
    %29 = memref.load %arg4[%c1_48, %c0_49] : memref<3x6xf32, #tpu.memory_space<smem>>
    %c1_50 = arith.constant 1 : index
    %c1_51 = arith.constant 1 : index
    %30 = memref.load %arg4[%c1_50, %c1_51] : memref<3x6xf32, #tpu.memory_space<smem>>
    %c1_52 = arith.constant 1 : index
    %c2_53 = arith.constant 2 : index
    %31 = memref.load %arg4[%c1_52, %c2_53] : memref<3x6xf32, #tpu.memory_space<smem>>
    %c1_54 = arith.constant 1 : index
    %c3_55 = arith.constant 3 : index
    %32 = memref.load %arg4[%c1_54, %c3_55] : memref<3x6xf32, #tpu.memory_space<smem>>
    %c1_56 = arith.constant 1 : index
    %c4_57 = arith.constant 4 : index
    %33 = memref.load %arg4[%c1_56, %c4_57] : memref<3x6xf32, #tpu.memory_space<smem>>
    %c1_58 = arith.constant 1 : index
    %c5_59 = arith.constant 5 : index
    %34 = memref.load %arg4[%c1_58, %c5_59] : memref<3x6xf32, #tpu.memory_space<smem>>
    %c2_60 = arith.constant 2 : index
    %c0_61 = arith.constant 0 : index
    %35 = memref.load %arg4[%c2_60, %c0_61] : memref<3x6xf32, #tpu.memory_space<smem>>
    %c2_62 = arith.constant 2 : index
    %c1_63 = arith.constant 1 : index
    %36 = memref.load %arg4[%c2_62, %c1_63] : memref<3x6xf32, #tpu.memory_space<smem>>
    %c2_64 = arith.constant 2 : index
    %c2_65 = arith.constant 2 : index
    %37 = memref.load %arg4[%c2_64, %c2_65] : memref<3x6xf32, #tpu.memory_space<smem>>
    %c2_66 = arith.constant 2 : index
    %c3_67 = arith.constant 3 : index
    %38 = memref.load %arg4[%c2_66, %c3_67] : memref<3x6xf32, #tpu.memory_space<smem>>
    %c2_68 = arith.constant 2 : index
    %c4_69 = arith.constant 4 : index
    %39 = memref.load %arg4[%c2_68, %c4_69] : memref<3x6xf32, #tpu.memory_space<smem>>
    %c2_70 = arith.constant 2 : index
    %c5_71 = arith.constant 5 : index
    %40 = memref.load %arg4[%c2_70, %c5_71] : memref<3x6xf32, #tpu.memory_space<smem>>
    %41 = math.sin %1 : vector<4x128xf32>
    %42 = math.cos %1 : vector<4x128xf32>
    %43 = vector.broadcast %2 : f32 to vector<4x128xf32>
    %44 = vector.broadcast %3 : f32 to vector<4x128xf32>
    %45 = vector.broadcast %4 : f32 to vector<4x128xf32>
    %46 = vector.broadcast %5 : f32 to vector<4x128xf32>
    %47 = arith.mulf %46, %41 : vector<4x128xf32>
    %48 = arith.addf %43, %47 : vector<4x128xf32>
    %49 = vector.broadcast %23 : f32 to vector<4x128xf32>
    %50 = arith.mulf %49, %42 : vector<4x128xf32>
    %51 = arith.addf %48, %50 : vector<4x128xf32>
    %52 = vector.broadcast %11 : f32 to vector<4x128xf32>
    %53 = arith.mulf %52, %41 : vector<4x128xf32>
    %54 = arith.addf %44, %53 : vector<4x128xf32>
    %55 = vector.broadcast %29 : f32 to vector<4x128xf32>
    %56 = arith.mulf %55, %42 : vector<4x128xf32>
    %57 = arith.addf %54, %56 : vector<4x128xf32>
    %58 = vector.broadcast %17 : f32 to vector<4x128xf32>
    %59 = arith.mulf %58, %41 : vector<4x128xf32>
    %60 = arith.addf %45, %59 : vector<4x128xf32>
    %61 = vector.broadcast %35 : f32 to vector<4x128xf32>
    %62 = arith.mulf %61, %42 : vector<4x128xf32>
    %63 = arith.addf %60, %62 : vector<4x128xf32>
    %64 = arith.mulf %41, %42 : vector<4x128xf32>
    %65 = arith.mulf %42, %41 : vector<4x128xf32>
    %66 = arith.addf %64, %65 : vector<4x128xf32>
    %67 = arith.mulf %42, %42 : vector<4x128xf32>
    %68 = arith.mulf %41, %41 : vector<4x128xf32>
    %69 = arith.subf %67, %68 : vector<4x128xf32>
    %70 = vector.broadcast %6 : f32 to vector<4x128xf32>
    %71 = arith.mulf %70, %66 : vector<4x128xf32>
    %72 = arith.addf %51, %71 : vector<4x128xf32>
    %73 = vector.broadcast %24 : f32 to vector<4x128xf32>
    %74 = arith.mulf %73, %69 : vector<4x128xf32>
    %75 = arith.addf %72, %74 : vector<4x128xf32>
    %76 = vector.broadcast %12 : f32 to vector<4x128xf32>
    %77 = arith.mulf %76, %66 : vector<4x128xf32>
    %78 = arith.addf %57, %77 : vector<4x128xf32>
    %79 = vector.broadcast %30 : f32 to vector<4x128xf32>
    %80 = arith.mulf %79, %69 : vector<4x128xf32>
    %81 = arith.addf %78, %80 : vector<4x128xf32>
    %82 = vector.broadcast %18 : f32 to vector<4x128xf32>
    %83 = arith.mulf %82, %66 : vector<4x128xf32>
    %84 = arith.addf %63, %83 : vector<4x128xf32>
    %85 = vector.broadcast %36 : f32 to vector<4x128xf32>
    %86 = arith.mulf %85, %69 : vector<4x128xf32>
    %87 = arith.addf %84, %86 : vector<4x128xf32>
    %88 = arith.mulf %66, %42 : vector<4x128xf32>
    %89 = arith.mulf %69, %41 : vector<4x128xf32>
    %90 = arith.addf %88, %89 : vector<4x128xf32>
    %91 = arith.mulf %69, %42 : vector<4x128xf32>
    %92 = arith.mulf %66, %41 : vector<4x128xf32>
    %93 = arith.subf %91, %92 : vector<4x128xf32>
    %94 = vector.broadcast %7 : f32 to vector<4x128xf32>
    %95 = arith.mulf %94, %90 : vector<4x128xf32>
    %96 = arith.addf %75, %95 : vector<4x128xf32>
    %97 = vector.broadcast %25 : f32 to vector<4x128xf32>
    %98 = arith.mulf %97, %93 : vector<4x128xf32>
    %99 = arith.addf %96, %98 : vector<4x128xf32>
    %100 = vector.broadcast %13 : f32 to vector<4x128xf32>
    %101 = arith.mulf %100, %90 : vector<4x128xf32>
    %102 = arith.addf %81, %101 : vector<4x128xf32>
    %103 = vector.broadcast %31 : f32 to vector<4x128xf32>
    %104 = arith.mulf %103, %93 : vector<4x128xf32>
    %105 = arith.addf %102, %104 : vector<4x128xf32>
    %106 = vector.broadcast %19 : f32 to vector<4x128xf32>
    %107 = arith.mulf %106, %90 : vector<4x128xf32>
    %108 = arith.addf %87, %107 : vector<4x128xf32>
    %109 = vector.broadcast %37 : f32 to vector<4x128xf32>
    %110 = arith.mulf %109, %93 : vector<4x128xf32>
    %111 = arith.addf %108, %110 : vector<4x128xf32>
    %112 = arith.mulf %90, %42 : vector<4x128xf32>
    %113 = arith.mulf %93, %41 : vector<4x128xf32>
    %114 = arith.addf %112, %113 : vector<4x128xf32>
    %115 = arith.mulf %93, %42 : vector<4x128xf32>
    %116 = arith.mulf %90, %41 : vector<4x128xf32>
    %117 = arith.subf %115, %116 : vector<4x128xf32>
    %118 = vector.broadcast %8 : f32 to vector<4x128xf32>
    %119 = arith.mulf %118, %114 : vector<4x128xf32>
    %120 = arith.addf %99, %119 : vector<4x128xf32>
    %121 = vector.broadcast %26 : f32 to vector<4x128xf32>
    %122 = arith.mulf %121, %117 : vector<4x128xf32>
    %123 = arith.addf %120, %122 : vector<4x128xf32>
    %124 = vector.broadcast %14 : f32 to vector<4x128xf32>
    %125 = arith.mulf %124, %114 : vector<4x128xf32>
    %126 = arith.addf %105, %125 : vector<4x128xf32>
    %127 = vector.broadcast %32 : f32 to vector<4x128xf32>
    %128 = arith.mulf %127, %117 : vector<4x128xf32>
    %129 = arith.addf %126, %128 : vector<4x128xf32>
    %130 = vector.broadcast %20 : f32 to vector<4x128xf32>
    %131 = arith.mulf %130, %114 : vector<4x128xf32>
    %132 = arith.addf %111, %131 : vector<4x128xf32>
    %133 = vector.broadcast %38 : f32 to vector<4x128xf32>
    %134 = arith.mulf %133, %117 : vector<4x128xf32>
    %135 = arith.addf %132, %134 : vector<4x128xf32>
    %136 = arith.mulf %114, %42 : vector<4x128xf32>
    %137 = arith.mulf %117, %41 : vector<4x128xf32>
    %138 = arith.addf %136, %137 : vector<4x128xf32>
    %139 = arith.mulf %117, %42 : vector<4x128xf32>
    %140 = arith.mulf %114, %41 : vector<4x128xf32>
    %141 = arith.subf %139, %140 : vector<4x128xf32>
    %142 = vector.broadcast %9 : f32 to vector<4x128xf32>
    %143 = arith.mulf %142, %138 : vector<4x128xf32>
    %144 = arith.addf %123, %143 : vector<4x128xf32>
    %145 = vector.broadcast %27 : f32 to vector<4x128xf32>
    %146 = arith.mulf %145, %141 : vector<4x128xf32>
    %147 = arith.addf %144, %146 : vector<4x128xf32>
    %148 = vector.broadcast %15 : f32 to vector<4x128xf32>
    %149 = arith.mulf %148, %138 : vector<4x128xf32>
    %150 = arith.addf %129, %149 : vector<4x128xf32>
    %151 = vector.broadcast %33 : f32 to vector<4x128xf32>
    %152 = arith.mulf %151, %141 : vector<4x128xf32>
    %153 = arith.addf %150, %152 : vector<4x128xf32>
    %154 = vector.broadcast %21 : f32 to vector<4x128xf32>
    %155 = arith.mulf %154, %138 : vector<4x128xf32>
    %156 = arith.addf %135, %155 : vector<4x128xf32>
    %157 = vector.broadcast %39 : f32 to vector<4x128xf32>
    %158 = arith.mulf %157, %141 : vector<4x128xf32>
    %159 = arith.addf %156, %158 : vector<4x128xf32>
    %160 = arith.mulf %138, %42 : vector<4x128xf32>
    %161 = arith.mulf %141, %41 : vector<4x128xf32>
    %162 = arith.addf %160, %161 : vector<4x128xf32>
    %163 = arith.mulf %141, %42 : vector<4x128xf32>
    %164 = arith.mulf %138, %41 : vector<4x128xf32>
    %165 = arith.subf %163, %164 : vector<4x128xf32>
    %166 = vector.broadcast %10 : f32 to vector<4x128xf32>
    %167 = arith.mulf %166, %162 : vector<4x128xf32>
    %168 = arith.addf %147, %167 : vector<4x128xf32>
    %169 = vector.broadcast %28 : f32 to vector<4x128xf32>
    %170 = arith.mulf %169, %165 : vector<4x128xf32>
    %171 = arith.addf %168, %170 : vector<4x128xf32>
    %172 = vector.broadcast %16 : f32 to vector<4x128xf32>
    %173 = arith.mulf %172, %162 : vector<4x128xf32>
    %174 = arith.addf %153, %173 : vector<4x128xf32>
    %175 = vector.broadcast %34 : f32 to vector<4x128xf32>
    %176 = arith.mulf %175, %165 : vector<4x128xf32>
    %177 = arith.addf %174, %176 : vector<4x128xf32>
    %178 = vector.broadcast %22 : f32 to vector<4x128xf32>
    %179 = arith.mulf %178, %162 : vector<4x128xf32>
    %180 = arith.addf %159, %179 : vector<4x128xf32>
    %181 = vector.broadcast %40 : f32 to vector<4x128xf32>
    %182 = arith.mulf %181, %165 : vector<4x128xf32>
    %183 = arith.addf %180, %182 : vector<4x128xf32>
    %c0_72 = arith.constant 0 : index
    %c0_73 = arith.constant 0 : index
    %c0_74 = arith.constant 0 : index
    %c0_75 = arith.constant 0 : index
    %184 = vector.load %arg6[%c0_72, %c0_73, %c0_74, %c0_75] : memref<1x3x4x128xf32, #tpu.memory_space<vmem>>, vector<1x1x4x128xf32>
    %185 = vector.shape_cast %184 : vector<1x1x4x128xf32> to vector<4x128xf32>
    %186 = vector.shape_cast %171 : vector<4x128xf32> to vector<1x1x4x128xf32>
    tpu.vector_store %arg6[%c0_72, %c0_73, %c0_74, %c0_75], %186 {strides = array<i32>} : memref<1x3x4x128xf32, #tpu.memory_space<vmem>>, vector<1x1x4x128xf32>,
    %c0_76 = arith.constant 0 : index
    %c1_77 = arith.constant 1 : index
    %c0_78 = arith.constant 0 : index
    %c0_79 = arith.constant 0 : index
    %187 = vector.load %arg6[%c0_76, %c1_77, %c0_78, %c0_79] : memref<1x3x4x128xf32, #tpu.memory_space<vmem>>, vector<1x1x4x128xf32>
    %188 = vector.shape_cast %187 : vector<1x1x4x128xf32> to vector<4x128xf32>
    %189 = vector.shape_cast %177 : vector<4x128xf32> to vector<1x1x4x128xf32>
    tpu.vector_store %arg6[%c0_76, %c1_77, %c0_78, %c0_79], %189 {strides = array<i32>} : memref<1x3x4x128xf32, #tpu.memory_space<vmem>>, vector<1x1x4x128xf32>,
    %c0_80 = arith.constant 0 : index
    %c2_81 = arith.constant 2 : index
    %c0_82 = arith.constant 0 : index
    %c0_83 = arith.constant 0 : index
    %190 = vector.load %arg6[%c0_80, %c2_81, %c0_82, %c0_83] : memref<1x3x4x128xf32, #tpu.memory_space<vmem>>, vector<1x1x4x128xf32>
    %191 = vector.shape_cast %190 : vector<1x1x4x128xf32> to vector<4x128xf32>
    %192 = vector.shape_cast %183 : vector<4x128xf32> to vector<1x1x4x128xf32>
    tpu.vector_store %arg6[%c0_80, %c2_81, %c0_82, %c0_83], %192 {strides = array<i32>} : memref<1x3x4x128xf32, #tpu.memory_space<vmem>>, vector<1x1x4x128xf32>,
    return
  }
  func.func @transform_0(%arg0: i32, %arg1: i32) -> i32 {
    %c0_i32 = arith.constant 0 : i32
    %c0_i32_0 = arith.constant 0 : i32
    return %c0_i32 : i32
  }
  func.func @transform_1(%arg0: i32, %arg1: i32) -> (i32, i32) {
    %c0_i32 = arith.constant 0 : i32
    %c0_i32_0 = arith.constant 0 : i32
    %c0_i32_1 = arith.constant 0 : i32
    return %c0_i32, %c0_i32_0 : i32, i32
  }
  func.func @transform_2(%arg0: i32, %arg1: i32) -> (i32, i32) {
    %c0_i32 = arith.constant 0 : i32
    %c0_i32_0 = arith.constant 0 : i32
    %c0_i32_1 = arith.constant 0 : i32
    return %c0_i32, %c0_i32_0 : i32, i32
  }
  func.func @transform_3(%arg0: i32, %arg1: i32) -> (i32, i32, i32) {
    %c0_i32 = arith.constant 0 : i32
    %c0_i32_0 = arith.constant 0 : i32
    return %arg0, %arg1, %c0_i32 : i32, i32, i32
  }
  func.func @transform_4(%arg0: i32, %arg1: i32) -> (i32, i32, i32, i32) {
    %c0_i32 = arith.constant 0 : i32
    %c0_i32_0 = arith.constant 0 : i32
    %c0_i32_1 = arith.constant 0 : i32
    return %arg0, %c0_i32, %arg1, %c0_i32_0 : i32, i32, i32, i32
  }
}

</mosaic_0001>

<llo_original>
// kernel: tpu_custom_call.1
$region0: #{tpu_custom_call.1}
  #allocation0 [shape = 'u32[]', space=smem, size = 0x4, offset = 0x4, fixed_abs, tag = 'smem constant byte address 0x4 - core index']
  #allocation1 [shape = 'u32[144,128]{1,0:T(1,128)}', space=vmem, size = 0x12000, scoped, tag = 'internal scratch']
  %s0 = inlined_call_operand.hbm [shape: f32[3], index: 0, kind: input, shape index: {}]
  %s1 = inlined_call_operand.hbm [shape: f32[3,6], index: 1, kind: input, shape index: {}]
  %s2 = inlined_call_operand.hbm [shape: f32[3,6], index: 2, kind: input, shape index: {}]
  %s3 = inlined_call_operand.vmem [shape: f32[2,4,128], index: 3, kind: input, shape index: {}]
  %s4 = inlined_call_operand.hbm [shape: f32[2,3,4,128], index: 4, kind: output, shape index: {}]
  %s5 = sld [smem:[#allocation0]]
  $region61: #{tpu_custom_call.1} parent=0
    _
  %s7 = ssub.s32 1, %s5
  %s8 = scalar_select 0, %s7, %s5
  $region1: #{tpu_custom_call.1} parent=0
    #allocation2 [shape = 'u8[512]{0}', space=smem, size = 0x200, scoped, tag = 'input window, operand 0, single buffered']
    #allocation3 [shape = 's32[2]{0}', space=sflag, size = 0x8, scoped, tag = 'scoped memory for tpu_custom_call.1']
    #allocation4 [shape = 's32[2]{0}', space=sflag, size = 0x8, scoped, tag = 'scoped memory for tpu_custom_call.1']
    #allocation5 [shape = 'u8[2048]{0}', space=smem, size = 0x800, scoped, tag = 'input window, operand 1, single buffered']
    #allocation6 [shape = 's32[1]{0}', space=sflag, size = 0x4, scoped, tag = 'scoped memory for tpu_custom_call.1']
    #allocation7 [shape = 'u8[2048]{0}', space=smem, size = 0x800, scoped, tag = 'input window, operand 2, single buffered']
    #allocation8 [shape = 'u8[12288]{0}', space=vmem, size = 0x3000, scoped, tag = 'output window, operand 0']
    %9 = vsyncpa [#allocation4], 0
    %10 = vsyncpa [#allocation6], 0
    %11 = vsyncpa [#allocation3], 0
    %s12 = scalar_lea.sflag [#allocation3], 1
    %13 = vsyncpa %s12, 0
    loop: start=0, step=1, limit=4
    $region2: #{tpu_custom_call.1} parent=1 // loop_pre_header
      _
    $region3: #{tpu_custom_call.1} parent=1 // loop_header
      %s15 = sphi 0, %s19
      %p16 = scmp.ge.s32.totalorder %s15, 4
      %s22 = sphi 0, %s34
      %s23 = sphi 0, %s30
      %s24 = sphi 0, %s22
      %s25 = sphi 0, %s23
      %s26 = sphi 0, %s24
      %s27 = sphi 0, %s25
      %s35 = sphi 0, %s35
      %s37 = sphi 0, %s35
      %s38 = sphi 0, %s37
      %s52 = sphi 0, %s38
      %s56 = sphi 0, %s56
      %s58 = sphi 0, %s56
      %s59 = sphi 0, %s58
      %s73 = sphi 0, %s59
      %s77 = sphi 0, %s77
      %s79 = sphi 0, %s77
      %s80 = sphi 0, %s79
      %s94 = sphi 0, %s80
      %s102 = sphi 0, %s104
      %s105 = sphi 0, %s102
      %s106 = sphi 0, %s105
      %s122 = sphi 0, %s106
      %s130 = sphi 0, %s132
      %s133 = sphi 0, %s130
      %s134 = sphi 0, %s133
      %s150 = sphi 0, %s134
    $region4: #{tpu_custom_call.1} parent=1 // loop_header_branch
      %18 = sbr.rel (%p16) target = $region8
    $region5: #{tpu_custom_call.1} parent=1 // loop_body
      %s20 = ssub.s32 %s15, 1
      %s21 = ssub.s32 %s15, 2
      %s28 = sadd.s32 1, %s23
      %p29 = scmp.ge.s32.totalorder %s28, 1
      %s30 = scalar_select %p29, 0, %s28
      %s31 = sadd.s32 1, %s22
      %s32 = scalar_select %p29, %s31, %s22
      %p33 = scmp.ge.s32.totalorder %s32, 2
      %s34 = scalar_select %p33, 0, %s32
      %s36 = sadd.s32 %s35, 1
      %p39 = scmp.eq.s32.totalorder %s15, 1
      %p40 = scmp.ne.s32.totalorder %s35, %s37
      %p41 = scmp.eq.s32.totalorder %s15, 0
      %p42 = por %p40, %p41
      %p43 = scmp.ne.s32.totalorder %s35, %s37
      %p44 = scmp.eq.s32.totalorder %s20, 1
      %p45 = por %p43, %p44
      %p46 = scmp.ne.s32.totalorder %s37, %s38
      %p47 = scmp.eq.s32.totalorder %s20, 0
      %p48 = por %p46, %p47
      %p49 = scmp.ne.s32.totalorder %s37, %s38
      %p50 = scmp.eq.s32.totalorder %s21, 1
      %p51 = por %p49, %p50
      %p53 = scmp.ne.s32.totalorder %s38, %s52
      %p54 = scmp.eq.s32.totalorder %s21, 0
      %p55 = por %p53, %p54
      %s57 = sadd.s32 %s56, 1
      %p60 = scmp.eq.s32.totalorder %s15, 1
      %p61 = scmp.ne.s32.totalorder %s56, %s58
      %p62 = scmp.eq.s32.totalorder %s15, 0
      %p63 = por %p61, %p62
      %p64 = scmp.ne.s32.totalorder %s56, %s58
      %p65 = scmp.eq.s32.totalorder %s20, 1
      %p66 = por %p64, %p65
      %p67 = scmp.ne.s32.totalorder %s58, %s59
      %p68 = scmp.eq.s32.totalorder %s20, 0
      %p69 = por %p67, %p68
      %p70 = scmp.ne.s32.totalorder %s58, %s59
      %p71 = scmp.eq.s32.totalorder %s21, 1
      %p72 = por %p70, %p71
      %p74 = scmp.ne.s32.totalorder %s59, %s73
      %p75 = scmp.eq.s32.totalorder %s21, 0
      %p76 = por %p74, %p75
      %s78 = sadd.s32 %s77, 1
      %p81 = scmp.eq.s32.totalorder %s15, 1
      %p82 = scmp.ne.s32.totalorder %s77, %s79
      %p83 = scmp.eq.s32.totalorder %s15, 0
      %p84 = por %p82, %p83
      %p85 = scmp.ne.s32.totalorder %s77, %s79
      %p86 = scmp.eq.s32.totalorder %s20, 1
      %p87 = por %p85, %p86
      %p88 = scmp.ne.s32.totalorder %s79, %s80
      %p89 = scmp.eq.s32.totalorder %s20, 0
      %p90 = por %p88, %p89
      %p91 = scmp.ne.s32.totalorder %s79, %s80
      %p92 = scmp.eq.s32.totalorder %s21, 1
      %p93 = por %p91, %p92
      %p95 = scmp.ne.s32.totalorder %s80, %s94
      %p96 = scmp.eq.s32.totalorder %s21, 0
      %p97 = por %p95, %p96
      %s98 = ssub.s32 %s22, %s34
      %s99 = ssub.s32 %s23, %s30
      %s100 = sor.u32 %s98, %s99
      %p101 = scmp.eq.s32.totalorder %s100, 0
      %s103 = sadd.s32 %s102, 1
      %s104 = scalar_select %p101, %s102, %s103
      %p107 = pneg %p101
      %p108 = scmp.eq.s32.totalorder %s15, 1
      %p109 = por %p107, %p108
      %p110 = scmp.ne.s32.totalorder %s102, %s105
      %p111 = scmp.eq.s32.totalorder %s15, 0
      %p112 = por %p110, %p111
      %p113 = scmp.ne.s32.totalorder %s102, %s105
      %p114 = scmp.eq.s32.totalorder %s20, 1
      %p115 = por %p113, %p114
      %p116 = scmp.ne.s32.totalorder %s105, %s106
      %p117 = scmp.eq.s32.totalorder %s20, 0
      %p118 = por %p116, %p117
      %p119 = scmp.ne.s32.totalorder %s105, %s106
      %p120 = scmp.eq.s32.totalorder %s21, 1
      %p121 = por %p119, %p120
      %p123 = scmp.ne.s32.totalorder %s106, %s122
      %p124 = scmp.eq.s32.totalorder %s21, 0
      %p125 = por %p123, %p124
      %s126 = ssub.s32 %s22, %s34
      %s127 = ssub.s32 %s23, %s30
      %s128 = sor.u32 %s126, %s127
      %p129 = scmp.eq.s32.totalorder %s128, 0
      %s131 = sadd.s32 %s130, 1
      %s132 = scalar_select %p129, %s130, %s131
      %p135 = pneg %p129
      %p136 = scmp.eq.s32.totalorder %s15, 1
      %p137 = por %p135, %p136
      %p138 = scmp.ne.s32.totalorder %s130, %s133
      %p139 = scmp.eq.s32.totalorder %s15, 0
      %p140 = por %p138, %p139
      %p141 = scmp.ne.s32.totalorder %s130, %s133
      %p142 = scmp.eq.s32.totalorder %s20, 1
      %p143 = por %p141, %p142
      %p144 = scmp.ne.s32.totalorder %s133, %s134
      %p145 = scmp.eq.s32.totalorder %s20, 0
      %p146 = por %p144, %p145
      %p147 = scmp.ne.s32.totalorder %s133, %s134
      %p148 = scmp.eq.s32.totalorder %s21, 1
      %p149 = por %p147, %p148
      %p151 = scmp.ne.s32.totalorder %s134, %s150
      %p152 = scmp.eq.s32.totalorder %s21, 0
      %p153 = por %p151, %p152
      %p154 = scmp.le.s32.totalorder 1, %s15
      %p155 = scmp.lt.s32.totalorder %s15, 3
      %p156 = pnand %p154, %p155
      %p157 = pneg %p156
      // Predicated region
      $region9: #{tpu_custom_call.1} parent=5 // pred_check
        _
      $region10: #{tpu_custom_call.1} parent=5 // pred_check_branch
        %159 = sbr.rel (%p156) target = $region12
      $region11: #{tpu_custom_call.1} parent=5 // pred_region
        %s160 = ssub.s32 %s15, 1
        // Predicated region
        $region13: #{tpu_custom_call.1} parent=11 // pred_check
          %p161 = pneg %p48
        $region14: #{tpu_custom_call.1} parent=11 // pred_check_branch
          %163 = sbr.rel (%p161) target = $region16
        $region15: #{tpu_custom_call.1} parent=11 // pred_region
          %s165 = ssub.s32 16, 16
          %166 = vsyncadd [#allocation4], %s165
          %169 = dma.hbm_to_smem %s0, 16, [#allocation2], [#allocation4]
        $region16: #{tpu_custom_call.1} parent=11 // pred_fallthru
          _
        // Predicated region
        $region17: #{tpu_custom_call.1} parent=11 // pred_check
          %p170 = pneg %p69
        $region18: #{tpu_custom_call.1} parent=11 // pred_check_branch
          %172 = sbr.rel (%p170) target = $region20
        $region19: #{tpu_custom_call.1} parent=11 // pred_region
          %s174 = ssub.s32 64, 64
          %175 = vsyncadd [#allocation6], %s174
          %178 = dma.hbm_to_smem %s1, 64, [#allocation5], [#allocation6]
        $region20: #{tpu_custom_call.1} parent=11 // pred_fallthru
          _
        // Predicated region
        $region21: #{tpu_custom_call.1} parent=11 // pred_check
          %p179 = pneg %p90
        $region22: #{tpu_custom_call.1} parent=11 // pred_check_branch
          %181 = sbr.rel (%p179) target = $region24
        $region23: #{tpu_custom_call.1} parent=11 // pred_region
          %s183 = ssub.s32 64, 64
          %184 = vsyncadd [#allocation6], %s183
          %187 = dma.hbm_to_smem %s2, 64, [#allocation7], [#allocation6]
        $region24: #{tpu_custom_call.1} parent=11 // pred_fallthru
          _
      $region12: #{tpu_custom_call.1} parent=5 // pred_fallthru
        _
      %p188 = scmp.lt.s32.totalorder %s15, 2
      // Predicated region
      $region25: #{tpu_custom_call.1} parent=5 // pred_check
        %p189 = pneg %p188
      $region26: #{tpu_custom_call.1} parent=5 // pred_check_branch
        %191 = sbr.rel (%p189) target = $region28
      $region27: #{tpu_custom_call.1} parent=5 // pred_region
        // Predicated region
        $region29: #{tpu_custom_call.1} parent=27 // pred_check
          %p192 = pneg %p112
        $region30: #{tpu_custom_call.1} parent=27 // pred_check_branch
          %194 = sbr.rel (%p192) target = $region32
        $region31: #{tpu_custom_call.1} parent=27 // pred_region
          %p195 = scmp.lt.s32.totalorder %s22, 1
          %s196 = scalar_select %p195, %s22, 1
          %p197 = scmp.lt.s32.totalorder %s23, 0
          %s198 = scalar_select %p197, %s23, 0
          %s199 = sadd.s32 %s198, %s196
          %s200 = smul.addr %s199, 4
          %s201 = scalar_lea.vmem %s3, %s200
        $region32: #{tpu_custom_call.1} parent=27 // pred_fallthru
          _
      $region28: #{tpu_custom_call.1} parent=5 // pred_fallthru
        _
      %p202 = scmp.le.s32.totalorder 1, %s15
      %p203 = scmp.lt.s32.totalorder %s15, 3
      %p204 = pnand %p202, %p203
      %p205 = pneg %p204
      // Predicated region
      $region33: #{tpu_custom_call.1} parent=5 // pred_check
        _
      $region34: #{tpu_custom_call.1} parent=5 // pred_check_branch
        %207 = sbr.rel (%p204) target = $region36
      $region35: #{tpu_custom_call.1} parent=5 // pred_region
        %s208 = ssub.s32 %s15, 1
        // Predicated region
        $region37: #{tpu_custom_call.1} parent=35 // pred_check
          %p209 = pneg %p48
        $region38: #{tpu_custom_call.1} parent=35 // pred_check_branch
          %211 = sbr.rel (%p209) target = $region40
        $region39: #{tpu_custom_call.1} parent=35 // pred_region
          %212 = dma.done [#allocation4], 16
        $region40: #{tpu_custom_call.1} parent=35 // pred_fallthru
          _
        // Predicated region
        $region41: #{tpu_custom_call.1} parent=35 // pred_check
          %p213 = pneg %p69
        $region42: #{tpu_custom_call.1} parent=35 // pred_check_branch
          %215 = sbr.rel (%p213) target = $region44
        $region43: #{tpu_custom_call.1} parent=35 // pred_region
          %216 = dma.done [#allocation6], 64
        $region44: #{tpu_custom_call.1} parent=35 // pred_fallthru
          _
        // Predicated region
        $region45: #{tpu_custom_call.1} parent=35 // pred_check
          %p217 = pneg %p90
        $region46: #{tpu_custom_call.1} parent=35 // pred_check_branch
          %219 = sbr.rel (%p217) target = $region48
        $region47: #{tpu_custom_call.1} parent=35 // pred_region
          %220 = dma.done [#allocation6], 64
        $region48: #{tpu_custom_call.1} parent=35 // pred_fallthru
          _
        %221 = sfence
        %p222 = pneg %p48
        %p223 = pneg %p45
        %p224 = pneg %p69
        %p225 = pneg %p66
        %p226 = pneg %p90
        %p227 = pneg %p87
        %p228 = scmp.lt.s32.totalorder %s24, 1
        %s229 = scalar_select %p228, %s24, 1
        %p230 = scmp.lt.s32.totalorder %s25, 0
        %s231 = scalar_select %p230, %s25, 0
        %s232 = sadd.s32 %s231, %s229
        %s233 = smul.addr %s232, 4
        %s234 = scalar_lea.vmem %s3, %s233
        %p235 = pneg %p118
        %p236 = pneg %p115
        %p237 = pneg %p146
        %p238 = pneg %p143
        %s239 = sand.u32 %s133, 1
        %s240 = scalar_lea.sflag [#allocation3], %s239
        %s241 = sand.u32 %s133, 1
        %s242 = smul.addr %s241, 12
        %s243 = scalar_lea.vmem [#allocation8], %s242
        %p244 = scmp.lt.s32.totalorder %s24, 1
        %s245 = scalar_select %p244, %s24, 1
        %p246 = scmp.lt.s32.totalorder %s25, 0
        %s247 = scalar_select %p246, %s25, 0
        %s248 = sadd.s32 %s247, %s245
        %s249 = smul.addr %s248, 4
        %s250 = scalar_lea.vmem %s3, %s249
        %v251 = vld [vmem:[%s250] sm:$0xf]
        %s252 = sld [smem:[#allocation2]]
        %s253 = sld [smem:[#allocation2 + $0x1]]
        %s254 = sld [smem:[#allocation2 + $0x2]]
        %s255 = sld [smem:[#allocation5]]
        %s256 = sld [smem:[#allocation5 + $0x1]]
        %s257 = sld [smem:[#allocation5 + $0x2]]
        %s258 = sld [smem:[#allocation5 + $0x3]]
        %s259 = sld [smem:[#allocation5 + $0x4]]
        %s260 = sld [smem:[#allocation5 + $0x5]]
        %s261 = sld [smem:[#allocation5 + $0x80]]
        %s262 = sld [smem:[#allocation5 + $0x81]]
        %s263 = sld [smem:[#allocation5 + $0x82]]
        %s264 = sld [smem:[#allocation5 + $0x83]]
        %s265 = sld [smem:[#allocation5 + $0x84]]
        %s266 = sld [smem:[#allocation5 + $0x85]]
        %s267 = sld [smem:[#allocation5 + $0x100]]
        %s268 = sld [smem:[#allocation5 + $0x101]]
        %s269 = sld [smem:[#allocation5 + $0x102]]
        %s270 = sld [smem:[#allocation5 + $0x103]]
        %s271 = sld [smem:[#allocation5 + $0x104]]
        %s272 = sld [smem:[#allocation5 + $0x105]]
        %s273 = sld [smem:[#allocation7]]
        %s274 = sld [smem:[#allocation7 + $0x1]]
        %s275 = sld [smem:[#allocation7 + $0x2]]
        %s276 = sld [smem:[#allocation7 + $0x3]]
        %s277 = sld [smem:[#allocation7 + $0x4]]
        %s278 = sld [smem:[#allocation7 + $0x5]]
        %s279 = sld [smem:[#allocation7 + $0x80]]
        %s280 = sld [smem:[#allocation7 + $0x81]]
        %s281 = sld [smem:[#allocation7 + $0x82]]
        %s282 = sld [smem:[#allocation7 + $0x83]]
        %s283 = sld [smem:[#allocation7 + $0x84]]
        %s284 = sld [smem:[#allocation7 + $0x85]]
        %s285 = sld [smem:[#allocation7 + $0x100]]
        %s286 = sld [smem:[#allocation7 + $0x101]]
        %s287 = sld [smem:[#allocation7 + $0x102]]
        %s288 = sld [smem:[#allocation7 + $0x103]]
        %s289 = sld [smem:[#allocation7 + $0x104]]
        %s290 = sld [smem:[#allocation7 + $0x105]]
        %v291 = vand.u32 2147483647, %v251
        %vm292 = vcmp.le.f32.partialorder %v291, 0.7853982
        %vm293 = vcmp.lt.s32.totalorder %v251, 0
        %v294 = vand.u32 %v251, 2139095040
        %v295 = vshrl.u32 %v294, 23
        %v296 = vsub.s32 %v295, 127
        %v297 = vand.u32 2147483647, %v251
        %v298 = vand.u32 %v297, 8388607
        %v299 = vor.u32 %v298, 8388608
        %v300 = vsub.s32 0, %v299
        %v301 = vadd.s32 %v296, 1
        %vm302 = vcmp.gt.s32.totalorder %v301, 0
        %v303 = vsel %vm302, %v301, 0
        %v304 = vshrl.u32 %v303, 5
        %v305 = vand.u32 %v303, 31
        %v306 = vsub.s32 32, %v305
        %v307 = vshrl.u32 683565275, %v306
        %v308 = vshll.u32 683565275, %v305
        %v309 = vshrl.u32 2475754826, %v306
        %v310 = vor.u32 %v308, %v309
        %v311 = vshll.u32 2475754826, %v305
        %v312 = vshrl.u32 2131351028, %v306
        %v313 = vor.u32 %v311, %v312
        %v314 = vshll.u32 2131351028, %v305
        %v315 = vshrl.u32 2102212464, %v306
        %v316 = vor.u32 %v314, %v315
        %v317 = vshll.u32 2102212464, %v305
        %v318 = vshrl.u32 920167782, %v306
        %v319 = vor.u32 %v317, %v318
        %v320 = vshll.u32 920167782, %v305
        %v321 = vshrl.u32 1326507024, %v306
        %v322 = vor.u32 %v320, %v321
        %vm323 = vcmp.lt.s32.totalorder %v304, 1
        %vm324 = vcmp.lt.s32.totalorder %v304, 2
        %vm325 = vcmp.lt.s32.totalorder %v304, 3
        %vm326 = vcmp.lt.s32.totalorder %v304, 4
        %v327 = vsel %vm323, %v307, %v310
        %v328 = vsel %vm326, %v316, 2102212464
        %v329 = vsel %vm325, %v313, %v328
        %v330 = vsel %vm324, %v327, %v329
        %v331 = vsel %vm323, %v310, %v313
        %v332 = vsel %vm326, %v319, 920167782
        %v333 = vsel %vm325, %v316, %v332
        %v334 = vsel %vm324, %v331, %v333
        %v335 = vsel %vm323, %v313, %v316
        %v336 = vsel %vm326, %v322, 1326507024
        %v337 = vsel %vm325, %v319, %v336
        %v338 = vsel %vm324, %v335, %v337
        %v339 = vshll.u32 %v299, 8
        %v340 = vmul.u32.u64.compose %v339, %v338
        %v341 = vextract.low.u32 %v340
        %v342 = vextract.high.u32 %v340
        %v343 = vmul.u32.u64.compose %v339, %v334
        %v344 = vextract.low.u32 %v343
        %v345 = vextract.high.u32 %v343
        %v346 = vmul.u32 %v339, %v330
        %v347 = vadd.s32 %v342, %v344
        %vm348 = vc.u32 %v342, %v344
        %v349 = vadd.s32 %v345, 1
        %v350 = vsel %vm348, %v349, %v345
        %v351 = vadd.s32 %v346, %v350
        %v352 = vadd.s32 %v351, 536870912
        %v353 = vshrl.u32 %v352, 30
        %v354 = vshll.u32 %v353, 30
        %v355 = vsub.s32 %v351, %v354
        %vm356 = vcmp.lt.s32.totalorder %v355, 0
        %v357 = vsub.s32 0, %v355
        %v358 = vsel %vm356, %v357, %v355
        %v359 = vclz %v358
        %v360 = vsub.s32 %v359, 2
        %vm361 = vcmp.gt.s32.totalorder 0, %v360
        %v362 = vsel %vm361, 0, %v360
        %v363 = vsub.s32 32, %v362
        %v364 = vshll.u32 %v355, %v362
        %v365 = vshrl.u32 %v347, %v363
        %v366 = vor.u32 %v364, %v365
        %v367 = vsub.s32 4294967266, %v362
        %v368 = vadd.s32 %v367, 127
        %v369 = vshll.u32 %v368, 23
        %v370 = vor.u32 4788187, %v369
        %v371 = vand.u32 2147483647, %v370
        %v373 = vcvt.s32.f32 %v366
        %v374 = vmul.f32 %v373, %v371
        %v375 = vxor.u32 %v374, 2147483648
        %v376 = vsel %vm293, %v375, %v374
        %v377 = vsub.s32 4, %v353
        %v378 = vsel %vm293, %v377, %v353
        %v379 = vsel %vm292, %v251, %v376
        %v380 = vsel %vm292, 0, %v378
        %v381 = vcosq.f32.pop %v379
        %v382 = vsinq.f32.pop %v379
        %vm383 = vweird.f32 %v251
        %v384 = vadd.s32 %v380, 3
        %v385 = vand.u32 %v384, 3
        %vm386 = vcmp.lt.s32.totalorder %v385, 2
        %vm387 = vcmp.eq.s32.totalorder %v385, 0
        %v388 = vxor.u32 %v382, 2147483648
        %v389 = vsel %vm387, %v381, %v388
        %vm390 = vcmp.eq.s32.totalorder %v385, 2
        %v391 = vxor.u32 %v381, 2147483648
        %v392 = vsel %vm390, %v391, %v382
        %v393 = vsel %vm386, %v389, %v392
        %v394 = vsel %vm383, nan, %v393
        %v395 = vand.u32 2147483647, %v251
        %vm396 = vcmp.le.f32.partialorder %v395, 0.7853982
        %vm397 = vcmp.lt.s32.totalorder %v251, 0
        %v398 = vand.u32 %v251, 2139095040
        %v399 = vshrl.u32 %v398, 23
        %v400 = vsub.s32 %v399, 127
        %v401 = vand.u32 2147483647, %v251
        %v402 = vand.u32 %v401, 8388607
        %v403 = vor.u32 %v402, 8388608
        %v404 = vsub.s32 0, %v403
        %v405 = vadd.s32 %v400, 1
        %vm406 = vcmp.gt.s32.totalorder %v405, 0
        %v407 = vsel %vm406, %v405, 0
        %v408 = vshrl.u32 %v407, 5
        %v409 = vand.u32 %v407, 31
        %v410 = vsub.s32 32, %v409
        %v411 = vshrl.u32 683565275, %v410
        %v412 = vshll.u32 683565275, %v409
        %v413 = vshrl.u32 2475754826, %v410
        %v414 = vor.u32 %v412, %v413
        %v415 = vshll.u32 2475754826, %v409
        %v416 = vshrl.u32 2131351028, %v410
        %v417 = vor.u32 %v415, %v416
        %v418 = vshll.u32 2131351028, %v409
        %v419 = vshrl.u32 2102212464, %v410
        %v420 = vor.u32 %v418, %v419
        %v421 = vshll.u32 2102212464, %v409
        %v422 = vshrl.u32 920167782, %v410
        %v423 = vor.u32 %v421, %v422
        %v424 = vshll.u32 920167782, %v409
        %v425 = vshrl.u32 1326507024, %v410
        %v426 = vor.u32 %v424, %v425
        %vm427 = vcmp.lt.s32.totalorder %v408, 1
        %vm428 = vcmp.lt.s32.totalorder %v408, 2
        %vm429 = vcmp.lt.s32.totalorder %v408, 3
        %vm430 = vcmp.lt.s32.totalorder %v408, 4
        %v431 = vsel %vm427, %v411, %v414
        %v432 = vsel %vm430, %v420, 2102212464
        %v433 = vsel %vm429, %v417, %v432
        %v434 = vsel %vm428, %v431, %v433
        %v435 = vsel %vm427, %v414, %v417
        %v436 = vsel %vm430, %v423, 920167782
        %v437 = vsel %vm429, %v420, %v436
        %v438 = vsel %vm428, %v435, %v437
        %v439 = vsel %vm427, %v417, %v420
        %v440 = vsel %vm430, %v426, 1326507024
        %v441 = vsel %vm429, %v423, %v440
        %v442 = vsel %vm428, %v439, %v441
        %v443 = vshll.u32 %v403, 8
        %v444 = vmul.u32.u64.compose %v443, %v442
        %v445 = vextract.low.u32 %v444
        %v446 = vextract.high.u32 %v444
        %v447 = vmul.u32.u64.compose %v443, %v438
        %v448 = vextract.low.u32 %v447
        %v449 = vextract.high.u32 %v447
        %v450 = vmul.u32 %v443, %v434
        %v451 = vadd.s32 %v446, %v448
        %vm452 = vc.u32 %v446, %v448
        %v453 = vadd.s32 %v449, 1
        %v454 = vsel %vm452, %v453, %v449
        %v455 = vadd.s32 %v450, %v454
        %v456 = vadd.s32 %v455, 536870912
        %v457 = vshrl.u32 %v456, 30
        %v458 = vshll.u32 %v457, 30
        %v459 = vsub.s32 %v455, %v458
        %vm460 = vcmp.lt.s32.totalorder %v459, 0
        %v461 = vsub.s32 0, %v459
        %v462 = vsel %vm460, %v461, %v459
        %v463 = vclz %v462
        %v464 = vsub.s32 %v463, 2
        %vm465 = vcmp.gt.s32.totalorder 0, %v464
        %v466 = vsel %vm465, 0, %v464
        %v467 = vsub.s32 32, %v466
        %v468 = vshll.u32 %v459, %v466
        %v469 = vshrl.u32 %v451, %v467
        %v470 = vor.u32 %v468, %v469
        %v471 = vsub.s32 4294967266, %v466
        %v472 = vadd.s32 %v471, 127
        %v473 = vshll.u32 %v472, 23
        %v474 = vor.u32 4788187, %v473
        %v475 = vand.u32 2147483647, %v474
        %v477 = vcvt.s32.f32 %v470
        %v478 = vmul.f32 %v477, %v475
        %v479 = vxor.u32 %v478, 2147483648
        %v480 = vsel %vm397, %v479, %v478
        %v481 = vsub.s32 4, %v457
        %v482 = vsel %vm397, %v481, %v457
        %v483 = vsel %vm396, %v251, %v480
        %v484 = vsel %vm396, 0, %v482
        %v485 = vcosq.f32.pop %v483
        %v486 = vsinq.f32.pop %v483
        %vm487 = vweird.f32 %v251
        %v488 = vand.u32 %v484, 3
        %vm489 = vcmp.lt.s32.totalorder %v488, 2
        %vm490 = vcmp.eq.s32.totalorder %v488, 0
        %v491 = vxor.u32 %v486, 2147483648
        %v492 = vsel %vm490, %v485, %v491
        %vm493 = vcmp.eq.s32.totalorder %v488, 2
        %v494 = vxor.u32 %v485, 2147483648
        %v495 = vsel %vm493, %v494, %v486
        %v496 = vsel %vm489, %v492, %v495
        %v497 = vsel %vm487, nan, %v496
        %v498 = vstv %s252
        %v499 = vstv %s253
        %v500 = vstv %s254
        %v501 = vstv %s255
        %v502 = vmul.f32 %v501, %v394
        %v503 = vadd.f32 %v498, %v502
        %v504 = vstv %s273
        %v505 = vmul.f32 %v504, %v497
        %v506 = vadd.f32 %v503, %v505
        %v507 = vstv %s261
        %v508 = vmul.f32 %v507, %v394
        %v509 = vadd.f32 %v499, %v508
        %v510 = vstv %s279
        %v511 = vmul.f32 %v510, %v497
        %v512 = vadd.f32 %v509, %v511
        %v513 = vstv %s267
        %v514 = vmul.f32 %v513, %v394
        %v515 = vadd.f32 %v500, %v514
        %v516 = vstv %s285
        %v517 = vmul.f32 %v516, %v497
        %v518 = vadd.f32 %v515, %v517
        %v519 = vmul.f32 %v394, %v497
        %v520 = vadd.f32 %v519, %v519
        %v521 = vmul.f32 %v497, %v497
        %v522 = vmul.f32 %v394, %v394
        %v523 = vsub.f32 %v521, %v522
        %v524 = vstv %s256
        %v525 = vmul.f32 %v524, %v520
        %v526 = vadd.f32 %v506, %v525
        %v527 = vstv %s274
        %v528 = vmul.f32 %v527, %v523
        %v529 = vadd.f32 %v526, %v528
        %v530 = vstv %s262
        %v531 = vmul.f32 %v530, %v520
        %v532 = vadd.f32 %v512, %v531
        %v533 = vstv %s280
        %v534 = vmul.f32 %v533, %v523
        %v535 = vadd.f32 %v532, %v534
        %v536 = vstv %s268
        %v537 = vmul.f32 %v536, %v520
        %v538 = vadd.f32 %v518, %v537
        %v539 = vstv %s286
        %v540 = vmul.f32 %v539, %v523
        %v541 = vadd.f32 %v538, %v540
        %v542 = vmul.f32 %v520, %v497
        %v543 = vmul.f32 %v523, %v394
        %v544 = vadd.f32 %v542, %v543
        %v545 = vmul.f32 %v523, %v497
        %v546 = vmul.f32 %v520, %v394
        %v547 = vsub.f32 %v545, %v546
        %v548 = vstv %s257
        %v549 = vmul.f32 %v548, %v544
        %v550 = vadd.f32 %v529, %v549
        %v551 = vstv %s275
        %v552 = vmul.f32 %v551, %v547
        %v553 = vadd.f32 %v550, %v552
        %v554 = vstv %s263
        %v555 = vmul.f32 %v554, %v544
        %v556 = vadd.f32 %v535, %v555
        %v557 = vstv %s281
        %v558 = vmul.f32 %v557, %v547
        %v559 = vadd.f32 %v556, %v558
        %v560 = vstv %s269
        %v561 = vmul.f32 %v560, %v544
        %v562 = vadd.f32 %v541, %v561
        %v563 = vstv %s287
        %v564 = vmul.f32 %v563, %v547
        %v565 = vadd.f32 %v562, %v564
        %v566 = vmul.f32 %v544, %v497
        %v567 = vmul.f32 %v547, %v394
        %v568 = vadd.f32 %v566, %v567
        %v569 = vmul.f32 %v547, %v497
        %v570 = vmul.f32 %v544, %v394
        %v571 = vsub.f32 %v569, %v570
        %v572 = vstv %s258
        %v573 = vmul.f32 %v572, %v568
        %v574 = vadd.f32 %v553, %v573
        %v575 = vstv %s276
        %v576 = vmul.f32 %v575, %v571
        %v577 = vadd.f32 %v574, %v576
        %v578 = vstv %s264
        %v579 = vmul.f32 %v578, %v568
        %v580 = vadd.f32 %v559, %v579
        %v581 = vstv %s282
        %v582 = vmul.f32 %v581, %v571
        %v583 = vadd.f32 %v580, %v582
        %v584 = vstv %s270
        %v585 = vmul.f32 %v584, %v568
        %v586 = vadd.f32 %v565, %v585
        %v587 = vstv %s288
        %v588 = vmul.f32 %v587, %v571
        %v589 = vadd.f32 %v586, %v588
        %v590 = vmul.f32 %v568, %v497
        %v591 = vmul.f32 %v571, %v394
        %v592 = vadd.f32 %v590, %v591
        %v593 = vmul.f32 %v571, %v497
        %v594 = vmul.f32 %v568, %v394
        %v595 = vsub.f32 %v593, %v594
        %v596 = vstv %s259
        %v597 = vmul.f32 %v596, %v592
        %v598 = vadd.f32 %v577, %v597
        %v599 = vstv %s277
        %v600 = vmul.f32 %v599, %v595
        %v601 = vadd.f32 %v598, %v600
        %v602 = vstv %s265
        %v603 = vmul.f32 %v602, %v592
        %v604 = vadd.f32 %v583, %v603
        %v605 = vstv %s283
        %v606 = vmul.f32 %v605, %v595
        %v607 = vadd.f32 %v604, %v606
        %v608 = vstv %s271
        %v609 = vmul.f32 %v608, %v592
        %v610 = vadd.f32 %v589, %v609
        %v611 = vstv %s289
        %v612 = vmul.f32 %v611, %v595
        %v613 = vadd.f32 %v610, %v612
        %v614 = vmul.f32 %v592, %v497
        %v615 = vmul.f32 %v595, %v394
        %v616 = vadd.f32 %v614, %v615
        %v617 = vmul.f32 %v595, %v497
        %v618 = vmul.f32 %v592, %v394
        %v619 = vsub.f32 %v617, %v618
        %v620 = vstv %s260
        %v621 = vmul.f32 %v620, %v616
        %v622 = vadd.f32 %v601, %v621
        %v623 = vstv %s278
        %v624 = vmul.f32 %v623, %v619
        %v625 = vadd.f32 %v622, %v624
        %v626 = vstv %s266
        %v627 = vmul.f32 %v626, %v616
        %v628 = vadd.f32 %v607, %v627
        %v629 = vstv %s284
        %v630 = vmul.f32 %v629, %v619
        %v631 = vadd.f32 %v628, %v630
        %v632 = vstv %s272
        %v633 = vmul.f32 %v632, %v616
        %v634 = vadd.f32 %v613, %v633
        %v635 = vstv %s290
        %v636 = vmul.f32 %v635, %v619
        %v637 = vadd.f32 %v634, %v636
        %638 = vst [vmem:[%s243] sm:$0xf] %v625
        %s639 = scalar_lea.vmem %s243, 4 [#allocation8]
        %640 = vst [vmem:[%s639] sm:$0xf] %v631
        %s641 = scalar_lea.vmem %s243, 8 [#allocation8]
        %642 = vst [vmem:[%s641] sm:$0xf] %v637
        %s643 = sand.u32 %s133, 1
        %s644 = scalar_lea.sflag [#allocation3], %s643
        %s645 = sand.u32 %s133, 1
        %s646 = smul.addr %s645, 12
        %s647 = scalar_lea.vmem [#allocation8], %s646
        // Predicated region
        $region49: #{tpu_custom_call.1} parent=35 // pred_check
          %p648 = pneg %p143
        $region50: #{tpu_custom_call.1} parent=35 // pred_check_branch
          %650 = sbr.rel (%p648) target = $region52
        $region51: #{tpu_custom_call.1} parent=35 // pred_region
          %s652 = ssub.s32 192, 192
          %653 = vsyncadd %s644, %s652
          %s654 = smul.addr %s24, 3
          %s655 = sadd.s32 %s25, %s654
          %s656 = smul.addr %s655, 64
          %s657 = scalar_lea.hbm %s4, %s656
          %s658 = sshll.u32 %s647, 4
          %s659 = int_to_ptr.vmem [resolvable:$true] %s658
          %664 = dma.vmem_to_hbm [thread:$0]  %s659, 192, %s657, %s644, 64, 64, 4
        $region52: #{tpu_custom_call.1} parent=35 // pred_fallthru
          _
      $region36: #{tpu_custom_call.1} parent=5 // pred_fallthru
        _
      %p665 = scmp.le.s32.totalorder 2, %s15
      // Predicated region
      $region53: #{tpu_custom_call.1} parent=5 // pred_check
        %p666 = pneg %p665
      $region54: #{tpu_custom_call.1} parent=5 // pred_check_branch
        %668 = sbr.rel (%p666) target = $region56
      $region55: #{tpu_custom_call.1} parent=5 // pred_region
        %s669 = ssub.s32 %s15, 2
        // Predicated region
        $region57: #{tpu_custom_call.1} parent=55 // pred_check
          %p670 = pneg %p149
        $region58: #{tpu_custom_call.1} parent=55 // pred_check_branch
          %672 = sbr.rel (%p670) target = $region60
        $region59: #{tpu_custom_call.1} parent=55 // pred_region
          %s673 = sand.u32 %s134, 1
          %s674 = scalar_lea.sflag [#allocation3], %s673
          %s675 = sand.u32 %s134, 1
          %s676 = smul.addr %s675, 12
          %s677 = scalar_lea.vmem [#allocation8], %s676
          %678 = dma.done %s674, 192
        $region60: #{tpu_custom_call.1} parent=55 // pred_fallthru
          _
      $region56: #{tpu_custom_call.1} parent=5 // pred_fallthru
        _
    $region6: #{tpu_custom_call.1} parent=1 // loop_footer
      %s19 = sadd.s32 1, %s15
    $region7: #{tpu_custom_call.1} parent=1 // loop_footer_branch
      %14 = sbr.rel target = $region3
    $region8: #{tpu_custom_call.1} parent=1 // loop_exit
      _
    %679 = vsyncpa [#allocation3], 1
    %s680 = scalar_lea.sflag [#allocation3], 1
    %681 = vsyncpa %s680, 1
    %682 = vsyncpa [#allocation4], 1
    %s683 = scalar_lea.sflag [#allocation4], 1
    %684 = vsyncpa %s683, 1
    %685 = vsyncpa [#allocation6], 1

</llo_original>
